<compile_context>
chip_gen: v7x
topology: tpu7x:2x2x1
jax: 0.10.0
libtpu: 0.0.40
codegen_flags: <defaults>
</compile_context>

<pallas_src>
import jax
import jax.numpy as jnp
from jax import lax
from jax.experimental import pallas as pl
from jax.experimental.pallas import tpu as pltpu


LANE_WIDTH = 128        # vreg lane count
TB_MAX = 64             # packed groups per grid step (sweepable: 32 / 64 / 128)
POOL_CHUNK = 16         # groups per softmax/pool chunk inside the kernel
SPLIT_MIN_GROUPS = 16   # per-half work (>=128 matmul rows) required before splitting
                        # a single grid step across 2 TensorCores


def _round_up(a, m):
    return -(-a // m) * m


def _num_tensorcores():
    """Best-effort TensorCore-per-device count (gates the megacore split)."""
    try:
        kind = jax.devices()[0].device_kind.lower()
    except Exception:
        return 1
    if "lite" in kind or "v5e" in kind or "v6e" in kind:
        return 1          # single TensorCore parts
    if "v4" in kind or "v5p" in kind or "v7" in kind:
        return 2          # megacore / dual-TC parts
    return 1


def pack_weightpool_params(w1, b1, w2, b2, matmul_dtype=None):
    """One-time packing of fc1/fc2 params (PyTorch (out, in) layout) into the
    lane-packed block-diagonal form the kernel consumes.  Call once; do NOT put
    this on the per-forward jit path (review feedback)."""
    E = w1.shape[0]
    G = LANE_WIDTH // E if (E <= LANE_WIDTH and LANE_WIDTH % E == 0) else 1
    C = G * E
    mm_dt = matmul_dtype if matmul_dtype is not None else w1.dtype
    eye_g = jnp.eye(G, dtype=w1.dtype)
    w1t_bd = jnp.kron(eye_g, w1.T).astype(mm_dt)      # (C, C) = blockdiag(W1^T)
    w2t_bd = jnp.kron(eye_g, w2.T).astype(mm_dt)      # (C, C) = blockdiag(W2^T)
    b1_t = jnp.tile(b1, G).reshape(1, C).astype(jnp.float32)
    b2_t = jnp.tile(b2, G).reshape(1, C).astype(jnp.float32)
    return (w1t_bd, b1_t, w2t_bd, b2_t)


def weightpool_kernel(x_ref, w1t_ref, b1_ref, w2t_ref, b2_ref, o_ref,
                      xp_ref, s_ref):
    # x_ref : (TB, G, L, E) native-layout activations (TB packed groups)
    # xp_ref: (TB*L, C) lane-packed activations (VMEM scratch)
    # s_ref : (TB*L, C) fc2 pre-softmax scores     (VMEM scratch)
    TB, G, L, E = x_ref.shape
    C = G * E
    R = TB * L

    # ---- in-kernel lane packing: xp[t*L+l, g*E+e] = x[t, g, l, e] -----------
    # (static lane-slice stores; XLU/relayout work overlapped with MXU)
    for g in range(G):
        xp_ref[:, g * E:(g + 1) * E] = x_ref[:, g, :, :].reshape(R, C // G)

    # ---- fc1 + ReLU, fc2 on the full (TB*L, C) slab (fills MXU M dim) -------
    a = xp_ref[...].astype(w1t_ref.dtype)             # bf16 cast if requested
    h = jnp.dot(a, w1t_ref[...], preferred_element_type=jnp.float32)
    h = jnp.maximum(h + b1_ref[...], 0.0)              # bias + ReLU in f32
    s = jnp.dot(h.astype(w2t_ref.dtype), w2t_ref[...],
                preferred_element_type=jnp.float32)
    s_ref[...] = s + b2_ref[...]

    # ---- softmax over L + weighted pooling, chunked to bound live vregs -----
    if TB % POOL_CHUNK == 0:
        CH = POOL_CHUNK
    elif TB % 8 == 0:
        CH = 8
    else:
        CH = TB
    n_chunks = TB // CH

    def chunk_body(c, carry):
        g0 = pl.multiple_of(c * CH, CH)
        r0 = pl.multiple_of(c * (CH * L), CH * L)
        sc = s_ref[pl.ds(r0, CH * L), :].reshape(CH, L, C)
        xv = xp_ref[pl.ds(r0, CH * L), :].reshape(CH, L, C).astype(jnp.float32)
        m = jnp.max(sc, axis=1, keepdims=True)                       # (CH,1,C)
        e = jnp.exp(sc - m)                                          # (CH,L,C)
        # exact divide (bit-parity with the f32 reference; the approx EUP
        # reciprocal previously exceeded the test tolerance)
        w = e / jnp.sum(e, axis=1, keepdims=True)
        pooled = jnp.sum(xv * w, axis=1)                             # (CH,C)
        o_ref[pl.ds(g0, CH), :] = pooled.astype(o_ref.dtype)
        return carry

    lax.fori_loop(0, n_chunks, chunk_body, 0, unroll=True)


@jax.jit
def weightpool_forward(vec, params):
    """vec: (B, L, E); params: output of pack_weightpool_params."""
    w1t_bd, b1_t, w2t_bd, b2_t = params
    B, L, E = vec.shape
    C = w1t_bd.shape[0]
    G = C // E

    # ---- grid sizing ---------------------------------------------------------
    groups = _round_up(-(-B // G), 8)          # multiple of 8 -> dense output tiles
    if groups <= TB_MAX:
        if _num_tensorcores() >= 2 and groups >= 2 * SPLIT_MIN_GROUPS:
            # megacore sharding: only when each TC's step carries >=128 rows
            num_steps = 2
            TB = _round_up(-(-groups // 2), 8)
        else:
            num_steps = 1
            TB = groups
    else:
        num_steps = -(-groups // TB_MAX)
        TB = _round_up(-(-groups // num_steps), 8)
    groups_pad = TB * num_steps
    B_pad = groups_pad * G

    # Zero-pad the batch; padded groups give pooled zeros that are sliced away.
    vec_p = jnp.pad(vec, ((0, B_pad - B), (0, 0), (0, 0))) if B_pad != B else vec
    # Leading-dim split only -> free view, no extra HBM pass (packing is in-kernel).
    x4 = vec_p.reshape(groups_pad, G, L, E)

    out = pl.pallas_call(
        weightpool_kernel,
        out_shape=jax.ShapeDtypeStruct((groups_pad, C), vec.dtype),
        grid_spec=pltpu.PrefetchScalarGridSpec(
            num_scalar_prefetch=0,
            grid=(num_steps,),
            in_specs=[
                pl.BlockSpec((TB, G, L, E), lambda i: (i, 0, 0, 0)),  # activations
                pl.BlockSpec((C, C), lambda i: (0, 0)),               # blockdiag(W1^T)
                pl.BlockSpec((1, C), lambda i: (0, 0)),               # b1 (tiled)
                pl.BlockSpec((C, C), lambda i: (0, 0)),               # blockdiag(W2^T)
                pl.BlockSpec((1, C), lambda i: (0, 0)),               # b2 (tiled)
            ],
            out_specs=pl.BlockSpec((TB, C), lambda i: (i, 0)),        # dense (TB,C)
            scratch_shapes=[
                pltpu.VMEM((TB * L, C), vec.dtype),    # lane-packed activations
                pltpu.VMEM((TB * L, C), jnp.float32),  # fc2 scores
            ],
        ),
        compiler_params=pltpu.CompilerParams(
            dimension_semantics=("parallel",),
        ),
        # VMEM footprint at TB=64, C=128, f32: ~2.8 MiB incl. double buffering —
        # far below the scoped limit on every generation (v7x: 64 MiB physical).
    )(x4, w1t_bd, b1_t, w2t_bd, b2_t)

    # Unpack lanes back to batch: out[t, g*E + e] -> batch t*G + g, feature e.
    return out.reshape(groups_pad * G, E)[:B]


def reference_forward(vec, w1, b1, w2, b2):
    h = jnp.maximum(jnp.einsum("ble,oe->blo", vec, w1) + b1, 0.0)
    s = jnp.einsum("ble,oe->blo", h, w2) + b2
    w = jax.nn.softmax(s, axis=1)
    return jnp.sum(vec * w, axis=1)


if __name__ == "__main__":
    E, L = 32, 8   # opt.embed_size, short sequence
    key = jax.random.PRNGKey(0)
    k_vec, k_w1, k_b1, k_w2, k_b2, k_vec2, k_vec3 = jax.random.split(key, 7)

    bound = 1.0 / (E ** 0.5)
    w1 = jax.random.uniform(k_w1, (E, E), jnp.float32, -bound, bound)
    b1 = jax.random.uniform(k_b1, (E,), jnp.float32, -bound, bound)
    w2 = jax.random.uniform(k_w2, (E, E), jnp.float32, -bound, bound)
    b2 = jax.random.uniform(k_b2, (E,), jnp.float32, -bound, bound)

    params = pack_weightpool_params(w1, b1, w2, b2)

    # 1) Module-consistent small shape: batch=2, seq=8, embed=32.
    B = 2
    vec = jax.random.normal(k_vec, (B, L, E), dtype=jnp.float32)
    out = weightpool_forward(vec, params)
    jax.block_until_ready(out)
    ref = reference_forward(vec, w1, b1, w2, b2)
    assert out.shape == (B, E)
    assert jnp.allclose(out, ref, atol=1e-4, rtol=1e-4), \
        float(jnp.max(jnp.abs(out - ref)))

    # 2) Padding + lane-packing path (B not a multiple of the packing factor).
    B2 = 37
    vec2 = jax.random.normal(k_vec2, (B2, L, E), dtype=jnp.float32)
    out2 = weightpool_forward(vec2, params)
    jax.block_until_ready(out2)
    ref2 = reference_forward(vec2, w1, b1, w2, b2)
    assert out2.shape == (B2, E)
    assert jnp.allclose(out2, ref2, atol=1e-4, rtol=1e-4), \
        float(jnp.max(jnp.abs(out2 - ref2)))

    # 3) Multi-grid-step path (groups > TB_MAX).
    B3 = 300
    vec3 = jax.random.normal(k_vec3, (B3, L, E), dtype=jnp.float32)
    out3 = weightpool_forward(vec3, params)
    jax.block_until_ready(out3)
    ref3 = reference_forward(vec3, w1, b1, w2, b2)
    assert out3.shape == (B3, E)
    assert jnp.allclose(out3, ref3, atol=1e-4, rtol=1e-4), \
        float(jnp.max(jnp.abs(out3 - ref3)))

    # 4) bf16 matmul-operand path (v5e/v6e MXU feedback); looser tolerance since
    #    the reference keeps f32 matmuls.
    params_bf16 = pack_weightpool_params(w1, b1, w2, b2,
                                         matmul_dtype=jnp.bfloat16)
    out4 = weightpool_forward(vec2, params_bf16)
    jax.block_until_ready(out4)
    assert jnp.allclose(out4, ref2, atol=3e-2, rtol=3e-2), \
        float(jnp.max(jnp.abs(out4 - ref2)))

    print("KERNEL_OK")
</pallas_src>

<mosaic_0001>
module attributes {stable_mosaic.version = 11 : i64} {
  func.func @weightpool_kernel(%arg0: i32, %arg1: memref<8x4x8x32xf32, #tpu.memory_space<vmem>>, %arg2: memref<128x128xf32, #tpu.memory_space<vmem>>, %arg3: memref<1x128xf32, #tpu.memory_space<vmem>>, %arg4: memref<128x128xf32, #tpu.memory_space<vmem>>, %arg5: memref<1x128xf32, #tpu.memory_space<vmem>>, %arg6: memref<8x128xf32, #tpu.memory_space<vmem>>, %arg7: memref<64x128xf32, #tpu.memory_space<vmem>>, %arg8: memref<64x128xf32, #tpu.memory_space<vmem>>) attributes {dimension_semantics = [#tpu.dimension_semantics<parallel>], iteration_bounds = array<i64: 1>, scalar_prefetch = 0 : i64, scratch_operands = 2 : i64, tpu.core_type = #tpu.core_type<tc>, window_params = [{transform_indices = @transform_0, window_bounds = array<i64: 8, 4, 8, 32>}, {pipeline_mode = #tpu.pipeline_mode<synchronous>, transform_indices = @transform_1, window_bounds = array<i64: 128, 128>}, {pipeline_mode = #tpu.pipeline_mode<synchronous>, transform_indices = @transform_2, window_bounds = array<i64: 1, 128>}, {pipeline_mode = #tpu.pipeline_mode<synchronous>, transform_indices = @transform_3, window_bounds = array<i64: 128, 128>}, {pipeline_mode = #tpu.pipeline_mode<synchronous>, transform_indices = @transform_4, window_bounds = array<i64: 1, 128>}, {transform_indices = @transform_5, window_bounds = array<i64: 8, 128>}]} {
    %c0 = arith.constant 0 : index
    %c0_0 = arith.constant 0 : index
    %c0_1 = arith.constant 0 : index
    %c0_2 = arith.constant 0 : index
    %0 = vector.load %arg1[%c0, %c0_0, %c0_1, %c0_2] : memref<8x4x8x32xf32, #tpu.memory_space<vmem>>, vector<8x1x8x32xf32>
    %1 = vector.shape_cast %0 : vector<8x1x8x32xf32> to vector<8x8x32xf32>
    %2 = vector.shape_cast %1 : vector<8x8x32xf32> to vector<64x32xf32>
    %c0_3 = arith.constant 0 : index
    %c0_4 = arith.constant 0 : index
    %3 = vector.load %arg7[%c0_3, %c0_4] : memref<64x128xf32, #tpu.memory_space<vmem>>, vector<64x32xf32>
    tpu.vector_store %arg7[%c0_3, %c0_4], %2 {strides = array<i32>} : memref<64x128xf32, #tpu.memory_space<vmem>>, vector<64x32xf32>,
    %c0_5 = arith.constant 0 : index
    %c1 = arith.constant 1 : index
    %c0_6 = arith.constant 0 : index
    %c0_7 = arith.constant 0 : index
    %4 = vector.load %arg1[%c0_5, %c1, %c0_6, %c0_7] : memref<8x4x8x32xf32, #tpu.memory_space<vmem>>, vector<8x1x8x32xf32>
    %5 = vector.shape_cast %4 : vector<8x1x8x32xf32> to vector<8x8x32xf32>
    %6 = vector.shape_cast %5 : vector<8x8x32xf32> to vector<64x32xf32>
    %c0_8 = arith.constant 0 : index
    %c32 = arith.constant 32 : index
    %7 = vector.load %arg7[%c0_8, %c32] : memref<64x128xf32, #tpu.memory_space<vmem>>, vector<64x32xf32>
    tpu.vector_store %arg7[%c0_8, %c32], %6 {strides = array<i32>} : memref<64x128xf32, #tpu.memory_space<vmem>>, vector<64x32xf32>,
    %c0_9 = arith.constant 0 : index
    %c2 = arith.constant 2 : index
    %c0_10 = arith.constant 0 : index
    %c0_11 = arith.constant 0 : index
    %8 = vector.load %arg1[%c0_9, %c2, %c0_10, %c0_11] : memref<8x4x8x32xf32, #tpu.memory_space<vmem>>, vector<8x1x8x32xf32>
    %9 = vector.shape_cast %8 : vector<8x1x8x32xf32> to vector<8x8x32xf32>
    %10 = vector.shape_cast %9 : vector<8x8x32xf32> to vector<64x32xf32>
    %c0_12 = arith.constant 0 : index
    %c64 = arith.constant 64 : index
    %11 = vector.load %arg7[%c0_12, %c64] : memref<64x128xf32, #tpu.memory_space<vmem>>, vector<64x32xf32>
    tpu.vector_store %arg7[%c0_12, %c64], %10 {strides = array<i32>} : memref<64x128xf32, #tpu.memory_space<vmem>>, vector<64x32xf32>,
    %c0_13 = arith.constant 0 : index
    %c3 = arith.constant 3 : index
    %c0_14 = arith.constant 0 : index
    %c0_15 = arith.constant 0 : index
    %12 = vector.load %arg1[%c0_13, %c3, %c0_14, %c0_15] : memref<8x4x8x32xf32, #tpu.memory_space<vmem>>, vector<8x1x8x32xf32>
    %13 = vector.shape_cast %12 : vector<8x1x8x32xf32> to vector<8x8x32xf32>
    %14 = vector.shape_cast %13 : vector<8x8x32xf32> to vector<64x32xf32>
    %c0_16 = arith.constant 0 : index
    %c96 = arith.constant 96 : index
    %15 = vector.load %arg7[%c0_16, %c96] : memref<64x128xf32, #tpu.memory_space<vmem>>, vector<64x32xf32>
    tpu.vector_store %arg7[%c0_16, %c96], %14 {strides = array<i32>} : memref<64x128xf32, #tpu.memory_space<vmem>>, vector<64x32xf32>,
    %c0_17 = arith.constant 0 : index
    %c0_18 = arith.constant 0 : index
    %16 = vector.load %arg7[%c0_17, %c0_18] : memref<64x128xf32, #tpu.memory_space<vmem>>, vector<64x128xf32>
    %c0_19 = arith.constant 0 : index
    %c0_20 = arith.constant 0 : index
    %17 = vector.load %arg2[%c0_19, %c0_20] : memref<128x128xf32, #tpu.memory_space<vmem>>, vector<128x128xf32>
    %cst = arith.constant dense<0.000000e+00> : vector<64x128xf32>
    %18 = tpu.matmul %16, %17, %cst {dimension_numbers = #tpu.dot_dimension_numbers<[1], [0], [0], [1], [0, 0, 1, 1], [], []>} : vector<64x128xf32>, vector<128x128xf32>, vector<64x128xf32> -> vector<64x128xf32>
    %c0_21 = arith.constant 0 : index
    %c0_22 = arith.constant 0 : index
    %19 = vector.load %arg3[%c0_21, %c0_22] : memref<1x128xf32, #tpu.memory_space<vmem>>, vector<1x128xf32>
    %20 = vector.broadcast %19 : vector<1x128xf32> to vector<64x128xf32>
    %21 = arith.addf %18, %20 : vector<64x128xf32>
    %cst_23 = arith.constant 0.000000e+00 : f32
    %22 = vector.broadcast %cst_23 : f32 to vector<64x128xf32>
    %23 = arith.maximumf %21, %22 : vector<64x128xf32>
    %c0_24 = arith.constant 0 : index
    %c0_25 = arith.constant 0 : index
    %24 = vector.load %arg4[%c0_24, %c0_25] : memref<128x128xf32, #tpu.memory_space<vmem>>, vector<128x128xf32>
    %cst_26 = arith.constant dense<0.000000e+00> : vector<64x128xf32>
    %25 = tpu.matmul %23, %24, %cst_26 {dimension_numbers = #tpu.dot_dimension_numbers<[1], [0], [0], [1], [0, 0, 1, 1], [], []>} : vector<64x128xf32>, vector<128x128xf32>, vector<64x128xf32> -> vector<64x128xf32>
    %c0_27 = arith.constant 0 : index
    %c0_28 = arith.constant 0 : index
    %26 = vector.load %arg5[%c0_27, %c0_28] : memref<1x128xf32, #tpu.memory_space<vmem>>, vector<1x128xf32>
    %27 = vector.broadcast %26 : vector<1x128xf32> to vector<64x128xf32>
    %28 = arith.addf %25, %27 : vector<64x128xf32>
    %c0_29 = arith.constant 0 : index
    %c0_30 = arith.constant 0 : index
    %29 = vector.load %arg8[%c0_29, %c0_30] : memref<64x128xf32, #tpu.memory_space<vmem>>, vector<64x128xf32>
    tpu.vector_store %arg8[%c0_29, %c0_30], %28 {strides = array<i32>} : memref<64x128xf32, #tpu.memory_space<vmem>>, vector<64x128xf32>,
    %c0_i32 = arith.constant 0 : i32
    %c8_i32 = arith.constant 8 : i32
    %30 = arith.muli %c0_i32, %c8_i32 : i32
    %31 = tpu.assume_multiple %30, 8 : i32
    %c64_i32 = arith.constant 64 : i32
    %32 = arith.muli %c0_i32, %c64_i32 : i32
    %33 = tpu.assume_multiple %32, 64 : i32
    %34 = arith.index_cast %33 : i32 to index
    %c0_31 = arith.constant 0 : index
    %35 = vector.load %arg8[%34, %c0_31] : memref<64x128xf32, #tpu.memory_space<vmem>>, vector<64x128xf32>
    %36 = vector.shape_cast %35 : vector<64x128xf32> to vector<8x8x128xf32>
    %37 = arith.index_cast %33 : i32 to index
    %c0_32 = arith.constant 0 : index
    %38 = vector.load %arg7[%37, %c0_32] : memref<64x128xf32, #tpu.memory_space<vmem>>, vector<64x128xf32>
    %39 = vector.shape_cast %38 : vector<64x128xf32> to vector<8x8x128xf32>
    %cst_33 = arith.constant dense<0xFF800000> : vector<8x128xf32>
    %40 = vector.multi_reduction <maximumf>, %36, %cst_33 [1] : vector<8x8x128xf32> to vector<8x128xf32>
    %41 = vector.shape_cast %40 : vector<8x128xf32> to vector<8x1x128xf32>
    %42 = vector.broadcast %41 : vector<8x1x128xf32> to vector<8x8x128xf32>
    %43 = arith.subf %36, %42 : vector<8x8x128xf32>
    %44 = math.exp %43 : vector<8x8x128xf32>
    %cst_34 = arith.constant dense<0.000000e+00> : vector<8x128xf32>
    %45 = vector.multi_reduction <add>, %44, %cst_34 [1] : vector<8x8x128xf32> to vector<8x128xf32>
    %46 = vector.shape_cast %45 : vector<8x128xf32> to vector<8x1x128xf32>
    %47 = vector.broadcast %46 : vector<8x1x128xf32> to vector<8x8x128xf32>
    %48 = arith.divf %44, %47 : vector<8x8x128xf32>
    %49 = arith.mulf %39, %48 : vector<8x8x128xf32>
    %cst_35 = arith.constant dense<0.000000e+00> : vector<8x128xf32>
    %50 = vector.multi_reduction <add>, %49, %cst_35 [1] : vector<8x8x128xf32> to vector<8x128xf32>
    %51 = arith.index_cast %31 : i32 to index
    %c0_36 = arith.constant 0 : index
    %52 = vector.load %arg6[%51, %c0_36] : memref<8x128xf32, #tpu.memory_space<vmem>>, vector<8x128xf32>
    tpu.vector_store %arg6[%51, %c0_36], %50 {strides = array<i32>} : memref<8x128xf32, #tpu.memory_space<vmem>>, vector<8x128xf32>,
    %c1_i32 = arith.constant 1 : i32
    return
  }
  func.func @transform_0(%arg0: i32) -> (i32, i32, i32, i32) {
    %c0_i32 = arith.constant 0 : i32
    %c0_i32_0 = arith.constant 0 : i32
    %c0_i32_1 = arith.constant 0 : i32
    %c0_i32_2 = arith.constant 0 : i32
    return %arg0, %c0_i32, %c0_i32_0, %c0_i32_1 : i32, i32, i32, i32
  }
  func.func @transform_1(%arg0: i32) -> (i32, i32) {
    %c0_i32 = arith.constant 0 : i32
    %c0_i32_0 = arith.constant 0 : i32
    %c0_i32_1 = arith.constant 0 : i32
    return %c0_i32, %c0_i32_0 : i32, i32
  }
  func.func @transform_2(%arg0: i32) -> (i32, i32) {
    %c0_i32 = arith.constant 0 : i32
    %c0_i32_0 = arith.constant 0 : i32
    %c0_i32_1 = arith.constant 0 : i32
    return %c0_i32, %c0_i32_0 : i32, i32
  }
  func.func @transform_3(%arg0: i32) -> (i32, i32) {
    %c0_i32 = arith.constant 0 : i32
    %c0_i32_0 = arith.constant 0 : i32
    %c0_i32_1 = arith.constant 0 : i32
    return %c0_i32, %c0_i32_0 : i32, i32
  }
  func.func @transform_4(%arg0: i32) -> (i32, i32) {
    %c0_i32 = arith.constant 0 : i32
    %c0_i32_0 = arith.constant 0 : i32
    %c0_i32_1 = arith.constant 0 : i32
    return %c0_i32, %c0_i32_0 : i32, i32
  }
  func.func @transform_5(%arg0: i32) -> (i32, i32) {
    %c0_i32 = arith.constant 0 : i32
    %c0_i32_0 = arith.constant 0 : i32
    return %arg0, %c0_i32 : i32, i32
  }
}

</mosaic_0001>

<llo_original>
// kernel: weightpool_forward.1
$region0: #{weightpool_forward.1}
  #allocation0 [shape = 'u32[]', space=smem, size = 0x4, offset = 0x4, fixed_abs, tag = 'smem constant byte address 0x4 - core index']
  #allocation1 [shape = 'u32[144,128]{1,0:T(1,128)}', space=vmem, size = 0x12000, scoped, tag = 'internal scratch']
  #allocation2 [shape = 'f32[64,128]{1,0:T(8,128)}', space=vmem, size = 0x8000, scoped, tag = 'scratch operand']
  #allocation3 [shape = 'f32[64,128]{1,0:T(8,128)}', space=vmem, size = 0x8000, scoped, tag = 'scratch operand']
  %s0 = inlined_call_operand.vmem [shape: f32[8,4,8,32], index: 0, kind: input, shape index: {}]
  %s1 = inlined_call_operand.vmem [shape: f32[128,128], index: 1, kind: input, shape index: {}]
  %s2 = inlined_call_operand.vmem [shape: f32[1,128], index: 2, kind: input, shape index: {}]
  %s3 = inlined_call_operand.vmem [shape: f32[128,128], index: 3, kind: input, shape index: {}]
  %s4 = inlined_call_operand.vmem [shape: f32[1,128], index: 4, kind: input, shape index: {}]
  %s5 = inlined_call_operand.vmem [shape: f32[8,128], index: 5, kind: output, shape index: {}]
  %s6 = sld [smem:[#allocation0]]
  $region30: #{weightpool_forward.1} parent=0
    _
  %s8 = ssub.s32 1, %s6
  %s9 = scalar_select 0, %s8, %s6
  // Predicated region
  $region2: #{weightpool_forward.1} parent=0 // pred_check
    _
  $region3: #{weightpool_forward.1} parent=0 // pred_check_branch
    %11 = sbr.rel (0) target = $region5
  $region4: #{weightpool_forward.1} parent=0 // pred_region
    _
  $region5: #{weightpool_forward.1} parent=0 // pred_fallthru
    _
  // Predicated region
  $region6: #{weightpool_forward.1} parent=0 // pred_check
    _
  $region7: #{weightpool_forward.1} parent=0 // pred_check_branch
    %13 = sbr.rel (0) target = $region9
  $region8: #{weightpool_forward.1} parent=0 // pred_region
    _
  $region9: #{weightpool_forward.1} parent=0 // pred_fallthru
    _
  // Predicated region
  $region10: #{weightpool_forward.1} parent=0 // pred_check
    _
  $region11: #{weightpool_forward.1} parent=0 // pred_check_branch
    %15 = sbr.rel (0) target = $region13
  $region12: #{weightpool_forward.1} parent=0 // pred_region
    _
  $region13: #{weightpool_forward.1} parent=0 // pred_fallthru
    _
  // Predicated region
  $region14: #{weightpool_forward.1} parent=0 // pred_check
    _
  $region15: #{weightpool_forward.1} parent=0 // pred_check_branch
    %17 = sbr.rel (0) target = $region17
  $region16: #{weightpool_forward.1} parent=0 // pred_region
    _
  $region17: #{weightpool_forward.1} parent=0 // pred_fallthru
    _
  // Predicated region
  $region18: #{weightpool_forward.1} parent=0 // pred_check
    _
  $region19: #{weightpool_forward.1} parent=0 // pred_check_branch
    %19 = sbr.rel (0) target = $region21
  $region20: #{weightpool_forward.1} parent=0 // pred_region
    _
  $region21: #{weightpool_forward.1} parent=0 // pred_fallthru
    _
  %v20 = vld [vmem:[%s0] sm:$0xff]
  %v21 = vld [vmem:[%s0 + $0x20] sm:$0xff]
  %v22 = vld [vmem:[%s0 + $0x40] sm:$0xff]
  %v23 = vld [vmem:[%s0 + $0x60] sm:$0xff]
  %v24 = vld [vmem:[%s0 + $0x80] sm:$0xff]
  %v25 = vld [vmem:[%s0 + $0xa0] sm:$0xff]
  %v26 = vld [vmem:[%s0 + $0xc0] sm:$0xff]
  %v27 = vld [vmem:[%s0 + $0xe0] sm:$0xff]
  %vm28 = vcmask 261120
  %29 = vst.msk [vmem:[#allocation2] sm:$0xff] %vm28, %v20
  %30 = vst.msk [vmem:[#allocation2 + $0x8] sm:$0xff] %vm28, %v21
  %31 = vst.msk [vmem:[#allocation2 + $0x10] sm:$0xff] %vm28, %v22
  %32 = vst.msk [vmem:[#allocation2 + $0x18] sm:$0xff] %vm28, %v23
  %33 = vst.msk [vmem:[#allocation2 + $0x20] sm:$0xff] %vm28, %v24
  %34 = vst.msk [vmem:[#allocation2 + $0x28] sm:$0xff] %vm28, %v25
  %35 = vst.msk [vmem:[#allocation2 + $0x30] sm:$0xff] %vm28, %v26
  %36 = vst.msk [vmem:[#allocation2 + $0x38] sm:$0xff] %vm28, %v27
  %s37 = scalar_lea.vmem %s0, 8
  %v38 = vld [vmem:[%s37] sm:$0xff]
  %v39 = vld [vmem:[%s37 + $0x20] sm:$0xff]
  %v40 = vld [vmem:[%s37 + $0x40] sm:$0xff]
  %v41 = vld [vmem:[%s37 + $0x60] sm:$0xff]
  %v42 = vld [vmem:[%s37 + $0x80] sm:$0xff]
  %v43 = vld [vmem:[%s37 + $0xa0] sm:$0xff]
  %v44 = vld [vmem:[%s37 + $0xc0] sm:$0xff]
  %v45 = vld [vmem:[%s37 + $0xe0] sm:$0xff]
  %54 = vrot.lane.b32.xlu0 %v38, 32
  %v55 = vpop.permute.xlu0 %54
  %56 = vrot.lane.b32.xlu0 %v39, 32
  %v57 = vpop.permute.xlu0 %56
  %58 = vrot.lane.b32.xlu0 %v40, 32
  %v59 = vpop.permute.xlu0 %58
  %60 = vrot.lane.b32.xlu0 %v41, 32
  %v61 = vpop.permute.xlu0 %60
  %62 = vrot.lane.b32.xlu0 %v42, 32
  %v63 = vpop.permute.xlu0 %62
  %64 = vrot.lane.b32.xlu0 %v43, 32
  %v65 = vpop.permute.xlu0 %64
  %66 = vrot.lane.b32.xlu0 %v44, 32
  %v67 = vpop.permute.xlu0 %66
  %68 = vrot.lane.b32.xlu0 %v45, 32
  %v69 = vpop.permute.xlu0 %68
  %vm78 = vcmask 523520
  %79 = vst.msk [vmem:[#allocation2] sm:$0xff] %vm78, %v55
  %80 = vst.msk [vmem:[#allocation2 + $0x8] sm:$0xff] %vm78, %v57
  %81 = vst.msk [vmem:[#allocation2 + $0x10] sm:$0xff] %vm78, %v59
  %82 = vst.msk [vmem:[#allocation2 + $0x18] sm:$0xff] %vm78, %v61
  %83 = vst.msk [vmem:[#allocation2 + $0x20] sm:$0xff] %vm78, %v63
  %84 = vst.msk [vmem:[#allocation2 + $0x28] sm:$0xff] %vm78, %v65
  %85 = vst.msk [vmem:[#allocation2 + $0x30] sm:$0xff] %vm78, %v67
  %86 = vst.msk [vmem:[#allocation2 + $0x38] sm:$0xff] %vm78, %v69
  %s87 = scalar_lea.vmem %s0, 16
  %v88 = vld [vmem:[%s87] sm:$0xff]
  %v89 = vld [vmem:[%s87 + $0x20] sm:$0xff]
  %v90 = vld [vmem:[%s87 + $0x40] sm:$0xff]
  %v91 = vld [vmem:[%s87 + $0x60] sm:$0xff]
  %v92 = vld [vmem:[%s87 + $0x80] sm:$0xff]
  %v93 = vld [vmem:[%s87 + $0xa0] sm:$0xff]
  %v94 = vld [vmem:[%s87 + $0xc0] sm:$0xff]
  %v95 = vld [vmem:[%s87 + $0xe0] sm:$0xff]
  %104 = vrot.lane.b32.xlu0 %v88, 64
  %v105 = vpop.permute.xlu0 %104
  %106 = vrot.lane.b32.xlu0 %v89, 64
  %v107 = vpop.permute.xlu0 %106
  %108 = vrot.lane.b32.xlu0 %v90, 64
  %v109 = vpop.permute.xlu0 %108
  %110 = vrot.lane.b32.xlu0 %v91, 64
  %v111 = vpop.permute.xlu0 %110
  %112 = vrot.lane.b32.xlu0 %v92, 64
  %v113 = vpop.permute.xlu0 %112
  %114 = vrot.lane.b32.xlu0 %v93, 64
  %v115 = vpop.permute.xlu0 %114
  %116 = vrot.lane.b32.xlu0 %v94, 64
  %v117 = vpop.permute.xlu0 %116
  %118 = vrot.lane.b32.xlu0 %v95, 64
  %v119 = vpop.permute.xlu0 %118
  %vm128 = vcmask 785920
  %129 = vst.msk [vmem:[#allocation2] sm:$0xff] %vm128, %v105
  %130 = vst.msk [vmem:[#allocation2 + $0x8] sm:$0xff] %vm128, %v107
  %131 = vst.msk [vmem:[#allocation2 + $0x10] sm:$0xff] %vm128, %v109
  %132 = vst.msk [vmem:[#allocation2 + $0x18] sm:$0xff] %vm128, %v111
  %133 = vst.msk [vmem:[#allocation2 + $0x20] sm:$0xff] %vm128, %v113
  %134 = vst.msk [vmem:[#allocation2 + $0x28] sm:$0xff] %vm128, %v115
  %135 = vst.msk [vmem:[#allocation2 + $0x30] sm:$0xff] %vm128, %v117
  %136 = vst.msk [vmem:[#allocation2 + $0x38] sm:$0xff] %vm128, %v119
  %s137 = scalar_lea.vmem %s0, 24
  %v138 = vld [vmem:[%s137] sm:$0xff]
  %v139 = vld [vmem:[%s137 + $0x20] sm:$0xff]
  %v140 = vld [vmem:[%s137 + $0x40] sm:$0xff]
  %v141 = vld [vmem:[%s137 + $0x60] sm:$0xff]
  %v142 = vld [vmem:[%s137 + $0x80] sm:$0xff]
  %v143 = vld [vmem:[%s137 + $0xa0] sm:$0xff]
  %v144 = vld [vmem:[%s137 + $0xc0] sm:$0xff]
  %v145 = vld [vmem:[%s137 + $0xe0] sm:$0xff]
  %154 = vrot.lane.b32.xlu0 %v138, 96
  %v155 = vpop.permute.xlu0 %154
  %156 = vrot.lane.b32.xlu0 %v139, 96
  %v157 = vpop.permute.xlu0 %156
  %158 = vrot.lane.b32.xlu0 %v140, 96
  %v159 = vpop.permute.xlu0 %158
  %160 = vrot.lane.b32.xlu0 %v141, 96
  %v161 = vpop.permute.xlu0 %160
  %162 = vrot.lane.b32.xlu0 %v142, 96
  %v163 = vpop.permute.xlu0 %162
  %164 = vrot.lane.b32.xlu0 %v143, 96
  %v165 = vpop.permute.xlu0 %164
  %166 = vrot.lane.b32.xlu0 %v144, 96
  %v167 = vpop.permute.xlu0 %166
  %168 = vrot.lane.b32.xlu0 %v145, 96
  %v169 = vpop.permute.xlu0 %168
  %vm178 = vcmask 1048320
  %179 = vst.msk [vmem:[#allocation2] sm:$0xff] %vm178, %v155
  %180 = vst.msk [vmem:[#allocation2 + $0x8] sm:$0xff] %vm178, %v157
  %181 = vst.msk [vmem:[#allocation2 + $0x10] sm:$0xff] %vm178, %v159
  %182 = vst.msk [vmem:[#allocation2 + $0x18] sm:$0xff] %vm178, %v161
  %183 = vst.msk [vmem:[#allocation2 + $0x20] sm:$0xff] %vm178, %v163
  %184 = vst.msk [vmem:[#allocation2 + $0x28] sm:$0xff] %vm178, %v165
  %185 = vst.msk [vmem:[#allocation2 + $0x30] sm:$0xff] %vm178, %v167
  %186 = vst.msk [vmem:[#allocation2 + $0x38] sm:$0xff] %vm178, %v169
  %v187 = vld [vmem:[#allocation2] sm:$0xff]
  %v188 = vld [vmem:[#allocation2 + $0x8] sm:$0xff]
  %v189 = vld [vmem:[#allocation2 + $0x10] sm:$0xff]
  %v190 = vld [vmem:[#allocation2 + $0x18] sm:$0xff]
  %v191 = vld [vmem:[#allocation2 + $0x20] sm:$0xff]
  %v192 = vld [vmem:[#allocation2 + $0x28] sm:$0xff]
  %v193 = vld [vmem:[#allocation2 + $0x30] sm:$0xff]
  %v194 = vld [vmem:[#allocation2 + $0x38] sm:$0xff]
  %v195 = vld [vmem:[%s1] sm:$0xff]
  %v196 = vld [vmem:[%s1 + $0x8] sm:$0xff]
  %v197 = vld [vmem:[%s1 + $0x10] sm:$0xff]
  %v198 = vld [vmem:[%s1 + $0x18] sm:$0xff]
  %v199 = vld [vmem:[%s1 + $0x20] sm:$0xff]
  %v200 = vld [vmem:[%s1 + $0x28] sm:$0xff]
  %v201 = vld [vmem:[%s1 + $0x30] sm:$0xff]
  %v202 = vld [vmem:[%s1 + $0x38] sm:$0xff]
  %v203 = vld [vmem:[%s1 + $0x40] sm:$0xff]
  %v204 = vld [vmem:[%s1 + $0x48] sm:$0xff]
  %v205 = vld [vmem:[%s1 + $0x50] sm:$0xff]
  %v206 = vld [vmem:[%s1 + $0x58] sm:$0xff]
  %v207 = vld [vmem:[%s1 + $0x60] sm:$0xff]
  %v208 = vld [vmem:[%s1 + $0x68] sm:$0xff]
  %v209 = vld [vmem:[%s1 + $0x70] sm:$0xff]
  %v210 = vld [vmem:[%s1 + $0x78] sm:$0xff]
  %v211 = vld [vmem:[%s2] sm:$0x1]
  %v213 = vlaneseq
  %v214 = vshrl.u32 %v213, 7
  %v215 = vsub.s32 0, %v214
  %v216 = vrot.slane %v211, %v215
  %218 = vmatprep.subr.mxu0 0.0
  %219 = vmatpush1.msra.mxu0 %v195
  %220 = vmatprep.subr.mxu0 0.0
  %221 = vmatpush1.msra.mxu0 %v196
  %222 = vmatprep.subr.mxu0 0.0
  %223 = vmatpush1.msra.mxu0 %v197
  %224 = vmatprep.subr.mxu0 0.0
  %225 = vmatpush1.msra.mxu0 %v198
  %226 = vmatprep.subr.mxu0 0.0
  %227 = vmatpush1.msra.mxu0 %v199
  %228 = vmatprep.subr.mxu0 0.0
  %229 = vmatpush1.msra.mxu0 %v200
  %230 = vmatprep.subr.mxu0 0.0
  %231 = vmatpush1.msra.mxu0 %v201
  %232 = vmatprep.subr.mxu0 0.0
  %233 = vmatpush1.msra.mxu0 %v202
  %234 = vmatprep.subr.mxu0 0.0
  %235 = vmatpush1.msra.mxu0 %v203
  %236 = vmatprep.subr.mxu0 0.0
  %237 = vmatpush1.msra.mxu0 %v204
  %238 = vmatprep.subr.mxu0 0.0
  %239 = vmatpush1.msra.mxu0 %v205
  %240 = vmatprep.subr.mxu0 0.0
  %241 = vmatpush1.msra.mxu0 %v206
  %242 = vmatprep.subr.mxu0 0.0
  %243 = vmatpush1.msra.mxu0 %v207
  %244 = vmatprep.subr.mxu0 0.0
  %245 = vmatpush1.msra.mxu0 %v208
  %246 = vmatprep.subr.mxu0 0.0
  %247 = vmatpush1.msra.mxu0 %v209
  %248 = vmatprep.subr.mxu0 0.0
  %249 = vmatpush1.msra.mxu0 %v210
  %250 = vmatprep.subr.mxu0 0.0
  %251 = vmatpush1.msra.mxu0 0.0
  %252 = vmatprep.subr.mxu0 0.0
  %253 = vmatpush1.msra.mxu0 0.0
  %254 = vmatprep.subr.mxu0 0.0
  %255 = vmatpush1.msra.mxu0 0.0
  %256 = vmatprep.subr.mxu0 0.0
  %257 = vmatpush1.msra.mxu0 0.0
  %258 = vmatprep.subr.mxu0 0.0
  %259 = vmatpush1.msra.mxu0 0.0
  %260 = vmatprep.subr.mxu0 0.0
  %261 = vmatpush1.msra.mxu0 0.0
  %262 = vmatprep.subr.mxu0 0.0
  %263 = vmatpush1.msra.mxu0 0.0
  %264 = vmatprep.subr.mxu0 0.0
  %265 = vmatpush1.msra.mxu0 0.0
  %266 = vmatprep.subr.mxu0 0.0
  %267 = vmatpush1.msra.mxu0 0.0
  %268 = vmatprep.subr.mxu0 0.0
  %269 = vmatpush1.msra.mxu0 0.0
  %270 = vmatprep.subr.mxu0 0.0
  %271 = vmatpush1.msra.mxu0 0.0
  %272 = vmatprep.subr.mxu0 0.0
  %273 = vmatpush1.msra.mxu0 0.0
  %274 = vmatprep.subr.mxu0 0.0
  %275 = vmatpush1.msra.mxu0 0.0
  %276 = vmatprep.subr.mxu0 0.0
  %277 = vmatpush1.msra.mxu0 0.0
  %278 = vmatprep.subr.mxu0 0.0
  %279 = vmatpush1.msra.mxu0 0.0
  %280 = vmatprep.subr.mxu0 0.0
  %281 = vmatpush1.msra.mxu0 0.0
  %282 = vmatprep.mubr.f32.mxu0 0.0
  %283 = vmatmul.mubr.f32.gmra.mrb[0].mxu0 %v187
  %v284 = vpop.f32.mrb[0].mxu0
  %v285 = vadd.f32 %v216, %v284
  %v286 = vpop.f32.mrb[0].mxu0
  %287 = vmatprep.mubr.f32.mxu0 0.0
  %288 = vmatmul.mubr.f32.gmra.mrb[0].mxu0 %v188
  %v289 = vpop.f32.mrb[0].mxu0
  %v290 = vadd.f32 %v216, %v289
  %v291 = vpop.f32.mrb[0].mxu0
  %292 = vmatprep.mubr.f32.mxu0 0.0
  %293 = vmatmul.mubr.f32.gmra.mrb[0].mxu0 %v189
  %v294 = vpop.f32.mrb[0].mxu0
  %v295 = vadd.f32 %v216, %v294
  %v296 = vpop.f32.mrb[0].mxu0
  %297 = vmatprep.mubr.f32.mxu0 0.0
  %298 = vmatmul.mubr.f32.gmra.mrb[0].mxu0 %v190
  %v299 = vpop.f32.mrb[0].mxu0
  %v300 = vadd.f32 %v216, %v299
  %v301 = vpop.f32.mrb[0].mxu0
  %302 = vmatprep.mubr.f32.mxu0 0.0
  %303 = vmatmul.mubr.f32.gmra.mrb[0].mxu0 %v191
  %v304 = vpop.f32.mrb[0].mxu0
  %v305 = vadd.f32 %v216, %v304
  %v306 = vpop.f32.mrb[0].mxu0
  %307 = vmatprep.mubr.f32.mxu0 0.0
  %308 = vmatmul.mubr.f32.gmra.mrb[0].mxu0 %v192
  %v309 = vpop.f32.mrb[0].mxu0
  %v310 = vadd.f32 %v216, %v309
  %v311 = vpop.f32.mrb[0].mxu0
  %312 = vmatprep.mubr.f32.mxu0 0.0
  %313 = vmatmul.mubr.f32.gmra.mrb[0].mxu0 %v193
  %v314 = vpop.f32.mrb[0].mxu0
  %v315 = vadd.f32 %v216, %v314
  %v316 = vpop.f32.mrb[0].mxu0
  %317 = vmatprep.mubr.f32.mxu0 0.0
  %318 = vmatmul.mubr.f32.gmra.mrb[0].mxu0 %v194
  %v319 = vpop.f32.mrb[0].mxu0
  %v320 = vadd.f32 %v216, %v319
  %v321 = vpop.f32.mrb[0].mxu0
  %322 = vdwg.mxu0
  %v323 = vmax.f32 %v285, 0.0
  %v324 = vmax.f32 %v290, 0.0
  %v325 = vmax.f32 %v295, 0.0
  %v326 = vmax.f32 %v300, 0.0
  %v327 = vmax.f32 %v305, 0.0
  %v328 = vmax.f32 %v310, 0.0
  %v329 = vmax.f32 %v315, 0.0
  %v330 = vmax.f32 %v320, 0.0
  %v331 = vld [vmem:[%s3] sm:$0xff]
  %v332 = vld [vmem:[%s3 + $0x8] sm:$0xff]
  %v333 = vld [vmem:[%s3 + $0x10] sm:$0xff]
  %v334 = vld [vmem:[%s3 + $0x18] sm:$0xff]
  %v335 = vld [vmem:[%s3 + $0x20] sm:$0xff]
  %v336 = vld [vmem:[%s3 + $0x28] sm:$0xff]
  %v337 = vld [vmem:[%s3 + $0x30] sm:$0xff]
  %v338 = vld [vmem:[%s3 + $0x38] sm:$0xff]
  %v339 = vld [vmem:[%s3 + $0x40] sm:$0xff]
  %v340 = vld [vmem:[%s3 + $0x48] sm:$0xff]
  %v341 = vld [vmem:[%s3 + $0x50] sm:$0xff]
  %v342 = vld [vmem:[%s3 + $0x58] sm:$0xff]
  %v343 = vld [vmem:[%s3 + $0x60] sm:$0xff]
  %v344 = vld [vmem:[%s3 + $0x68] sm:$0xff]
  %v345 = vld [vmem:[%s3 + $0x70] sm:$0xff]
  %v346 = vld [vmem:[%s3 + $0x78] sm:$0xff]
  %v347 = vld [vmem:[%s4] sm:$0x1]
  %v349 = vlaneseq
  %v350 = vshrl.u32 %v349, 7
  %v351 = vsub.s32 0, %v350
  %v352 = vrot.slane %v347, %v351
  %354 = vmatprep.subr.mxu0 0.0
  %355 = vmatpush1.msra.mxu0 %v331
  %356 = vmatprep.subr.mxu0 0.0
  %357 = vmatpush1.msra.mxu0 %v332
  %358 = vmatprep.subr.mxu0 0.0
  %359 = vmatpush1.msra.mxu0 %v333
  %360 = vmatprep.subr.mxu0 0.0
  %361 = vmatpush1.msra.mxu0 %v334
  %362 = vmatprep.subr.mxu0 0.0
  %363 = vmatpush1.msra.mxu0 %v335
  %364 = vmatprep.subr.mxu0 0.0
  %365 = vmatpush1.msra.mxu0 %v336
  %366 = vmatprep.subr.mxu0 0.0
  %367 = vmatpush1.msra.mxu0 %v337
  %368 = vmatprep.subr.mxu0 0.0
  %369 = vmatpush1.msra.mxu0 %v338
  %370 = vmatprep.subr.mxu0 0.0
  %371 = vmatpush1.msra.mxu0 %v339
  %372 = vmatprep.subr.mxu0 0.0
  %373 = vmatpush1.msra.mxu0 %v340
  %374 = vmatprep.subr.mxu0 0.0
  %375 = vmatpush1.msra.mxu0 %v341
  %376 = vmatprep.subr.mxu0 0.0
  %377 = vmatpush1.msra.mxu0 %v342
  %378 = vmatprep.subr.mxu0 0.0
  %379 = vmatpush1.msra.mxu0 %v343
  %380 = vmatprep.subr.mxu0 0.0
  %381 = vmatpush1.msra.mxu0 %v344
  %382 = vmatprep.subr.mxu0 0.0
  %383 = vmatpush1.msra.mxu0 %v345
  %384 = vmatprep.subr.mxu0 0.0
  %385 = vmatpush1.msra.mxu0 %v346
  %386 = vmatprep.subr.mxu0 0.0
  %387 = vmatpush1.msra.mxu0 0.0
  %388 = vmatprep.subr.mxu0 0.0
  %389 = vmatpush1.msra.mxu0 0.0
  %390 = vmatprep.subr.mxu0 0.0
  %391 = vmatpush1.msra.mxu0 0.0
  %392 = vmatprep.subr.mxu0 0.0
  %393 = vmatpush1.msra.mxu0 0.0
  %394 = vmatprep.subr.mxu0 0.0
  %395 = vmatpush1.msra.mxu0 0.0
  %396 = vmatprep.subr.mxu0 0.0
  %397 = vmatpush1.msra.mxu0 0.0
  %398 = vmatprep.subr.mxu0 0.0
  %399 = vmatpush1.msra.mxu0 0.0
  %400 = vmatprep.subr.mxu0 0.0
  %401 = vmatpush1.msra.mxu0 0.0
  %402 = vmatprep.subr.mxu0 0.0
  %403 = vmatpush1.msra.mxu0 0.0
  %404 = vmatprep.subr.mxu0 0.0
  %405 = vmatpush1.msra.mxu0 0.0
  %406 = vmatprep.subr.mxu0 0.0
  %407 = vmatpush1.msra.mxu0 0.0
  %408 = vmatprep.subr.mxu0 0.0
  %409 = vmatpush1.msra.mxu0 0.0
  %410 = vmatprep.subr.mxu0 0.0
  %411 = vmatpush1.msra.mxu0 0.0
  %412 = vmatprep.subr.mxu0 0.0
  %413 = vmatpush1.msra.mxu0 0.0
  %414 = vmatprep.subr.mxu0 0.0
  %415 = vmatpush1.msra.mxu0 0.0
  %416 = vmatprep.subr.mxu0 0.0
  %417 = vmatpush1.msra.mxu0 0.0
  %418 = vmatprep.mubr.f32.mxu0 0.0
  %419 = vmatmul.mubr.f32.gmra.mrb[0].mxu0 %v323
  %v420 = vpop.f32.mrb[0].mxu0
  %v421 = vadd.f32 %v352, %v420
  %v422 = vpop.f32.mrb[0].mxu0
  %423 = vmatprep.mubr.f32.mxu0 0.0
  %424 = vmatmul.mubr.f32.gmra.mrb[0].mxu0 %v324
  %v425 = vpop.f32.mrb[0].mxu0
  %v426 = vadd.f32 %v352, %v425
  %v427 = vpop.f32.mrb[0].mxu0
  %428 = vmatprep.mubr.f32.mxu0 0.0
  %429 = vmatmul.mubr.f32.gmra.mrb[0].mxu0 %v325
  %v430 = vpop.f32.mrb[0].mxu0
  %v431 = vadd.f32 %v352, %v430
  %v432 = vpop.f32.mrb[0].mxu0
  %433 = vmatprep.mubr.f32.mxu0 0.0
  %434 = vmatmul.mubr.f32.gmra.mrb[0].mxu0 %v326
  %v435 = vpop.f32.mrb[0].mxu0
  %v436 = vadd.f32 %v352, %v435
  %v437 = vpop.f32.mrb[0].mxu0
  %438 = vmatprep.mubr.f32.mxu0 0.0
  %439 = vmatmul.mubr.f32.gmra.mrb[0].mxu0 %v327
  %v440 = vpop.f32.mrb[0].mxu0
  %v441 = vadd.f32 %v352, %v440
  %v442 = vpop.f32.mrb[0].mxu0
  %443 = vmatprep.mubr.f32.mxu0 0.0
  %444 = vmatmul.mubr.f32.gmra.mrb[0].mxu0 %v328
  %v445 = vpop.f32.mrb[0].mxu0
  %v446 = vadd.f32 %v352, %v445
  %v447 = vpop.f32.mrb[0].mxu0
  %448 = vmatprep.mubr.f32.mxu0 0.0
  %449 = vmatmul.mubr.f32.gmra.mrb[0].mxu0 %v329
  %v450 = vpop.f32.mrb[0].mxu0
  %v451 = vadd.f32 %v352, %v450
  %v452 = vpop.f32.mrb[0].mxu0
  %453 = vmatprep.mubr.f32.mxu0 0.0
  %454 = vmatmul.mubr.f32.gmra.mrb[0].mxu0 %v330
  %v455 = vpop.f32.mrb[0].mxu0
  %v456 = vadd.f32 %v352, %v455
  %v457 = vpop.f32.mrb[0].mxu0
  %458 = vdwg.mxu0
  %459 = vst [vmem:[#allocation3] sm:$0xff] %v421
  %460 = vst [vmem:[#allocation3 + $0x8] sm:$0xff] %v426
  %461 = vst [vmem:[#allocation3 + $0x10] sm:$0xff] %v431
  %462 = vst [vmem:[#allocation3 + $0x18] sm:$0xff] %v436
  %463 = vst [vmem:[#allocation3 + $0x20] sm:$0xff] %v441
  %464 = vst [vmem:[#allocation3 + $0x28] sm:$0xff] %v446
  %465 = vst [vmem:[#allocation3 + $0x30] sm:$0xff] %v451
  %466 = vst [vmem:[#allocation3 + $0x38] sm:$0xff] %v456
  %v467 = vld [vmem:[#allocation3] sm:$0xff]
  %v468 = vld [vmem:[#allocation3 + $0x8] sm:$0xff]
  %v469 = vld [vmem:[#allocation3 + $0x10] sm:$0xff]
  %v470 = vld [vmem:[#allocation3 + $0x18] sm:$0xff]
  %v471 = vld [vmem:[#allocation3 + $0x20] sm:$0xff]
  %v472 = vld [vmem:[#allocation3 + $0x28] sm:$0xff]
  %v473 = vld [vmem:[#allocation3 + $0x30] sm:$0xff]
  %v474 = vld [vmem:[#allocation3 + $0x38] sm:$0xff]
  %v475 = vld [vmem:[#allocation2] sm:$0xff]
  %v476 = vld [vmem:[#allocation2 + $0x8] sm:$0xff]
  %v477 = vld [vmem:[#allocation2 + $0x10] sm:$0xff]
  %v478 = vld [vmem:[#allocation2 + $0x18] sm:$0xff]
  %v479 = vld [vmem:[#allocation2 + $0x20] sm:$0xff]
  %v480 = vld [vmem:[#allocation2 + $0x28] sm:$0xff]
  %v481 = vld [vmem:[#allocation2 + $0x30] sm:$0xff]
  %v482 = vld [vmem:[#allocation2 + $0x38] sm:$0xff]
  %v483 = vrot.slane %v467, 4
  %v484 = vmax.f32 %v467, %v483
  %v485 = vrot.slane %v484, 2
  %v486 = vmax.f32 %v484, %v485
  %v487 = vrot.slane %v486, 1
  %v488 = vmax.f32 %v486, %v487
  %v489 = vrot.slane %v468, 4
  %v490 = vmax.f32 %v468, %v489
  %v491 = vrot.slane %v490, 2
  %v492 = vmax.f32 %v490, %v491
  %v493 = vrot.slane %v492, 1
  %v494 = vmax.f32 %v492, %v493
  %v495 = vrot.slane %v469, 4
  %v496 = vmax.f32 %v469, %v495
  %v497 = vrot.slane %v496, 2
  %v498 = vmax.f32 %v496, %v497
  %v499 = vrot.slane %v498, 1
  %v500 = vmax.f32 %v498, %v499
  %v501 = vrot.slane %v470, 4
  %v502 = vmax.f32 %v470, %v501
  %v503 = vrot.slane %v502, 2
  %v504 = vmax.f32 %v502, %v503
  %v505 = vrot.slane %v504, 1
  %v506 = vmax.f32 %v504, %v505
  %v507 = vrot.slane %v471, 4
  %v508 = vmax.f32 %v471, %v507
  %v509 = vrot.slane %v508, 2
  %v510 = vmax.f32 %v508, %v509
  %v511 = vrot.slane %v510, 1
  %v512 = vmax.f32 %v510, %v511
  %v513 = vrot.slane %v472, 4
  %v514 = vmax.f32 %v472, %v513
  %v515 = vrot.slane %v514, 2
  %v516 = vmax.f32 %v514, %v515
  %v517 = vrot.slane %v516, 1
  %v518 = vmax.f32 %v516, %v517
  %v519 = vrot.slane %v473, 4
  %v520 = vmax.f32 %v473, %v519
  %v521 = vrot.slane %v520, 2
  %v522 = vmax.f32 %v520, %v521
  %v523 = vrot.slane %v522, 1
  %v524 = vmax.f32 %v522, %v523
  %v525 = vrot.slane %v474, 4
  %v526 = vmax.f32 %v474, %v525
  %v527 = vrot.slane %v526, 2
  %v528 = vmax.f32 %v526, %v527
  %v529 = vrot.slane %v528, 1
  %v530 = vmax.f32 %v528, %v529
  %v531 = vsub.f32 %v467, %v488
  %v532 = vsub.f32 %v468, %v494
  %v533 = vsub.f32 %v469, %v500
  %v534 = vsub.f32 %v470, %v506
  %v535 = vsub.f32 %v471, %v512
  %v536 = vsub.f32 %v472, %v518
  %v537 = vsub.f32 %v473, %v524
  %v538 = vsub.f32 %v474, %v530
  %v539 = vmul.f32 %v531, 1.442695
  %v540 = vpow.pop %v539
  %v541 = vmul.f32 %v532, 1.442695
  %v542 = vpow.pop %v541
  %v543 = vmul.f32 %v533, 1.442695
  %v544 = vpow.pop %v543
  %v545 = vmul.f32 %v534, 1.442695
  %v546 = vpow.pop %v545
  %v547 = vmul.f32 %v535, 1.442695
  %v548 = vpow.pop %v547
  %v549 = vmul.f32 %v536, 1.442695
  %v550 = vpow.pop %v549
  %v551 = vmul.f32 %v537, 1.442695
  %v552 = vpow.pop %v551
  %v553 = vmul.f32 %v538, 1.442695
  %v554 = vpow.pop %v553
  %v555 = vrot.slane %v540, 4
  %v556 = vadd.f32 %v540, %v555
  %v557 = vrot.slane %v556, 2
  %v558 = vadd.f32 %v556, %v557
  %v559 = vrot.slane %v558, 1
  %v560 = vadd.f32 %v558, %v559
  %v561 = vrot.slane %v542, 4
  %v562 = vadd.f32 %v542, %v561
  %v563 = vrot.slane %v562, 2
  %v564 = vadd.f32 %v562, %v563
  %v565 = vrot.slane %v564, 1
  %v566 = vadd.f32 %v564, %v565
  %v567 = vrot.slane %v544, 4
  %v568 = vadd.f32 %v544, %v567
  %v569 = vrot.slane %v568, 2
  %v570 = vadd.f32 %v568, %v569
  %v571 = vrot.slane %v570, 1
  %v572 = vadd.f32 %v570, %v571
  %v573 = vrot.slane %v546, 4
  %v574 = vadd.f32 %v546, %v573
  %v575 = vrot.slane %v574, 2
  %v576 = vadd.f32 %v574, %v575
  %v577 = vrot.slane %v576, 1
  %v578 = vadd.f32 %v576, %v577
  %v579 = vrot.slane %v548, 4
  %v580 = vadd.f32 %v548, %v579
  %v581 = vrot.slane %v580, 2
  %v582 = vadd.f32 %v580, %v581
  %v583 = vrot.slane %v582, 1
  %v584 = vadd.f32 %v582, %v583
  %v585 = vrot.slane %v550, 4
  %v586 = vadd.f32 %v550, %v585
  %v587 = vrot.slane %v586, 2
  %v588 = vadd.f32 %v586, %v587
  %v589 = vrot.slane %v588, 1
  %v590 = vadd.f32 %v588, %v589
  %v591 = vrot.slane %v552, 4
  %v592 = vadd.f32 %v552, %v591
  %v593 = vrot.slane %v592, 2
  %v594 = vadd.f32 %v592, %v593
  %v595 = vrot.slane %v594, 1
  %v596 = vadd.f32 %v594, %v595
  %v597 = vrot.slane %v554, 4
  %v598 = vadd.f32 %v554, %v597
  %v599 = vrot.slane %v598, 2
  %v600 = vadd.f32 %v598, %v599
  %v601 = vrot.slane %v600, 1
  %v602 = vadd.f32 %v600, %v601
  %v603 = vrcp.pop %v560
  %v604 = vmul.f32 %v540, %v603
  %v605 = vrcp.pop %v566
  %v606 = vmul.f32 %v542, %v605
  %v607 = vrcp.pop %v572
  %v608 = vmul.f32 %v544, %v607
  %v609 = vrcp.pop %v578
  %v610 = vmul.f32 %v546, %v609
  %v611 = vrcp.pop %v584
  %v612 = vmul.f32 %v548, %v611
  %v613 = vrcp.pop %v590
  %v614 = vmul.f32 %v550, %v613
  %v615 = vrcp.pop %v596
  %v616 = vmul.f32 %v552, %v615
  %v617 = vrcp.pop %v602
  %v618 = vmul.f32 %v554, %v617
  %v619 = vmul.f32 %v475, %v604
  %v620 = vmul.f32 %v476, %v606
  %v621 = vmul.f32 %v477, %v608
  %v622 = vmul.f32 %v478, %v610
  %v623 = vmul.f32 %v479, %v612
  %v624 = vmul.f32 %v480, %v614
  %v625 = vmul.f32 %v481, %v616
  %v626 = vmul.f32 %v482, %v618
  %v627 = vrot.slane %v619, 4
  %v628 = vadd.f32 %v619, %v627
  %v629 = vrot.slane %v628, 2
  %v630 = vadd.f32 %v628, %v629
  %v631 = vrot.slane %v630, 1
  %v632 = vadd.f32 %v630, %v631
  %v633 = vrot.slane %v620, 4
  %v634 = vadd.f32 %v620, %v633
  %v635 = vrot.slane %v634, 2
  %v636 = vadd.f32 %v634, %v635
  %v637 = vrot.slane %v636, 1
  %v638 = vadd.f32 %v636, %v637
  %v639 = vrot.slane %v621, 4
  %v640 = vadd.f32 %v621, %v639
  %v641 = vrot.slane %v640, 2
  %v642 = vadd.f32 %v640, %v641
  %v643 = vrot.slane %v642, 1
  %v644 = vadd.f32 %v642, %v643
  %v645 = vrot.slane %v622, 4
  %v646 = vadd.f32 %v622, %v645
  %v647 = vrot.slane %v646, 2
  %v648 = vadd.f32 %v646, %v647
  %v649 = vrot.slane %v648, 1
  %v650 = vadd.f32 %v648, %v649
  %v651 = vrot.slane %v623, 4
  %v652 = vadd.f32 %v623, %v651
  %v653 = vrot.slane %v652, 2
  %v654 = vadd.f32 %v652, %v653
  %v655 = vrot.slane %v654, 1
  %v656 = vadd.f32 %v654, %v655
  %v657 = vrot.slane %v624, 4
  %v658 = vadd.f32 %v624, %v657
  %v659 = vrot.slane %v658, 2
  %v660 = vadd.f32 %v658, %v659
  %v661 = vrot.slane %v660, 1
  %v662 = vadd.f32 %v660, %v661
  %v663 = vrot.slane %v625, 4
  %v664 = vadd.f32 %v625, %v663
  %v665 = vrot.slane %v664, 2
  %v666 = vadd.f32 %v664, %v665
  %v667 = vrot.slane %v666, 1
  %v668 = vadd.f32 %v666, %v667
  %v669 = vrot.slane %v626, 4
  %v670 = vadd.f32 %v626, %v669
  %v671 = vrot.slane %v670, 2
  %v672 = vadd.f32 %v670, %v671
  %v673 = vrot.slane %v672, 1
  %v674 = vadd.f32 %v672, %v673
  %vm683 = vcmask 1041409
  %v684 = vsel %vm683, %v638, %v632
  %vm685 = vcmask 1042434
  %v686 = vsel %vm685, %v644, %v684
  %vm687 = vcmask 1043459
  %v688 = vsel %vm687, %v650, %v686
  %vm689 = vcmask 1044484
  %v690 = vsel %vm689, %v656, %v688
  %vm691 = vcmask 1045509
  %v692 = vsel %vm691, %v662, %v690
  %vm693 = vcmask 1046534
  %v694 = vsel %vm693, %v668, %v692
  %vm695 = vcmask 1047559
  %v696 = vsel %vm695, %v674, %v694
  %698 = vst [vmem:[%s5] sm:$0xff] %v696
  // Predicated region
  $region22: #{weightpool_forward.1} parent=0 // pred_check
    _
  $region23: #{weightpool_forward.1} parent=0 // pred_check_branch
    %700 = sbr.rel (0) target = $region25
  $region24: #{weightpool_forward.1} parent=0 // pred_region
    _
  $region25: #{weightpool_forward.1} parent=0 // pred_fallthru
    _
  // Predicated region
  $region26: #{weightpool_forward.1} parent=0 // pred_check
    _
  $region27: #{weightpool_forward.1} parent=0 // pred_check_branch
    %702 = sbr.rel (0) target = $region29
  $region28: #{weightpool_forward.1} parent=0 // pred_region
    _
  $region29: #{weightpool_forward.1} parent=0 // pred_fallthru
    _

</llo_original>
